<compile_context>
chip_gen: v7x
topology: tpu7x:2x2x1
jax: 0.10.0
libtpu: 0.0.40
codegen_flags: <defaults>
</compile_context>

<pallas_src>
import functools

import jax
import jax.numpy as jnp
from jax import lax
from jax.experimental import pallas as pl
from jax.experimental.pallas import tpu as pltpu


def _dense_pool_kernel(x_ref, o_ref, *, kernel_size):
    """Dense (stride-1) clamp-to-edge sliding max over a k x k window.

    x_ref / o_ref: (TC, H, W) blocks.  The PyTorch replicate padding is
    realized by the clamp; every slice below is unit-stride.
    """
    x = x_ref[...]
    _, h, w = x.shape

    # --- W (lane) axis: running max over taps dx = 0..k-1, clamped to col W-1.
    # For lanes j >= w-d the clamped tap value x[..., w-1] is already produced
    # by the in-range tap d' = w-1-j, so the tail filler only has to be
    # <= the true window max; reusing x's own tail (the dx=0 value) does that
    # with a plain 2-piece concat (no lane broadcast needed).
    rm = x
    for d in range(1, kernel_size):
        if d >= w:      # tap fully clamped -> already covered by smaller taps
            continue
        shifted = jnp.concatenate([x[:, :, d:], x[:, :, w - d:]], axis=2)
        rm = jnp.maximum(rm, shifted)

    # --- H (sublane) axis: same construction on the row-max intermediate.
    out = rm
    for d in range(1, kernel_size):
        if d >= h:
            continue
        shifted = jnp.concatenate([rm[:, d:, :], rm[:, h - d:, :]], axis=1)
        out = jnp.maximum(out, shifted)

    o_ref[...] = out


def _choose_block_channels(nc, plane_bytes, target_bytes=2 * 1024 * 1024):
    """Largest divisor of nc whose (tc, H, W) tile is roughly <= target_bytes,
    while keeping the grid >= 2 steps when possible (v7x megacore, pipelining)."""
    tc = max(1, min(nc, target_bytes // max(plane_bytes, 1)))
    while nc % tc:
        tc -= 1
    if tc == nc and nc >= 2:
        tc = nc // 2
        while nc % tc:
            tc -= 1
    return tc


def maxpool_stride1(x, kernel_size):
    """x: (N, C, H, W).  Matches MaxPoolStride1(kernel_size).forward(x)."""
    if kernel_size < 2:
        raise ValueError(
            "MaxPoolStride1 needs kernel_size >= 2 (stride = kernel_size - 1).")
    k = int(kernel_size)
    stride = k - 1

    N, C, H, W = x.shape
    nc = N * C
    xr = x.reshape(nc, H, W)                       # free: collapses leading dims

    plane_bytes = H * W * x.dtype.itemsize
    tc = _choose_block_channels(nc, plane_bytes)
    grid = (nc // tc,)

    kernel = functools.partial(_dense_pool_kernel, kernel_size=k)

    cost = pl.CostEstimate(
        flops=2 * (k - 1) * nc * H * W,            # separable window maxima
        transcendentals=0,
        bytes_accessed=2 * nc * H * W * x.dtype.itemsize,
    )

    dense = pl.pallas_call(
        kernel,
        out_shape=jax.ShapeDtypeStruct((nc, H, W), x.dtype),
        grid=grid,
        in_specs=[pl.BlockSpec((tc, H, W), lambda i: (i, 0, 0))],
        out_specs=pl.BlockSpec((tc, H, W), lambda i: (i, 0, 0)),
        compiler_params=pltpu.CompilerParams(
            dimension_semantics=("parallel",),
        ),
        cost_estimate=cost,
    )(xr)

    if stride == 1:                                # kernel_size == 2: done
        y = dense
    else:
        # TODO(synk): fold the stride-s subsample into the kernel (strided ref
        # loads via pl.ds(stride=...)) if kernel_size > 2 ever becomes hot;
        # done as an XLA slice here to keep all in-kernel slices unit-stride.
        y = dense[:, ::stride, ::stride]

    Ho, Wo = y.shape[1], y.shape[2]
    return y.reshape(N, C, Ho, Wo)


def _reference(x, kernel_size):
    """Pure-JAX replica of the PyTorch module (float inputs)."""
    pad = kernel_size - 1
    stride = pad
    xp = jnp.pad(x, ((0, 0), (0, 0), (0, pad), (0, pad)), mode="edge")
    return lax.reduce_window(
        xp,
        -jnp.inf,
        lax.max,
        window_dimensions=(1, 1, kernel_size, kernel_size),
        window_strides=(1, 1, stride, stride),
        padding="VALID",
    )


if __name__ == "__main__":
    key = jax.random.PRNGKey(0)
    k1, k2, k3 = jax.random.split(key, 3)

    # 1) Canonical darknet case: kernel_size=2 (pad = stride = 1, same-size out).
    x1 = jax.random.normal(k1, (2, 4, 16, 16), dtype=jnp.float32)
    y1 = jax.block_until_ready(maxpool_stride1(x1, 2))
    r1 = _reference(x1, 2)
    assert y1.shape == r1.shape, (y1.shape, r1.shape)
    assert jnp.allclose(y1, r1), "mismatch (k=2, 16x16)"

    # 2) Lane-aligned W=128, more channels -> multi-block grid path.
    x2 = jax.random.normal(k2, (2, 16, 24, 128), dtype=jnp.float32)
    y2 = jax.block_until_ready(maxpool_stride1(x2, 2))
    r2 = _reference(x2, 2)
    assert y2.shape == r2.shape, (y2.shape, r2.shape)
    assert jnp.allclose(y2, r2), "mismatch (k=2, 24x128)"

    # 3) kernel_size=3 (stride=2) path, odd H / non-multiple W.
    x3 = jax.random.normal(k3, (2, 4, 17, 20), dtype=jnp.float32)
    y3 = jax.block_until_ready(maxpool_stride1(x3, 3))
    r3 = _reference(x3, 3)
    assert y3.shape == r3.shape, (y3.shape, r3.shape)
    assert jnp.allclose(y3, r3), "mismatch (k=3, 17x20)"

    print("KERNEL_OK")
</pallas_src>

<mosaic_0001>
module attributes {stable_mosaic.version = 11 : i64} {
  func.func @_dense_pool_kernel(%arg0: i32, %arg1: memref<4x16x16xf32, #tpu.memory_space<vmem>>, %arg2: memref<4x16x16xf32, #tpu.memory_space<vmem>>) attributes {dimension_semantics = [#tpu.dimension_semantics<parallel>], iteration_bounds = array<i64: 2>, scalar_prefetch = 0 : i64, scratch_operands = 0 : i64, tpu.core_type = #tpu.core_type<tc>, window_params = [{transform_indices = @transform_0, window_bounds = array<i64: 4, 16, 16>}, {transform_indices = @transform_1, window_bounds = array<i64: 4, 16, 16>}]} {
    %c0 = arith.constant 0 : index
    %c0_0 = arith.constant 0 : index
    %c0_1 = arith.constant 0 : index
    %0 = vector.load %arg1[%c0, %c0_0, %c0_1] : memref<4x16x16xf32, #tpu.memory_space<vmem>>, vector<4x16x16xf32>
    %1 = vector.extract_strided_slice %0 {offsets = [0, 0, 1], sizes = [4, 16, 15], strides = [1, 1, 1]} : vector<4x16x16xf32> to vector<4x16x15xf32>
    %2 = vector.extract_strided_slice %0 {offsets = [0, 0, 15], sizes = [4, 16, 1], strides = [1, 1, 1]} : vector<4x16x16xf32> to vector<4x16x1xf32>
    %3 = tpu.concatenate %1, %2 in 2 : vector<4x16x15xf32>, vector<4x16x1xf32> -> vector<4x16x16xf32>
    %4 = arith.maximumf %0, %3 : vector<4x16x16xf32>
    %5 = vector.extract_strided_slice %4 {offsets = [0, 1, 0], sizes = [4, 15, 16], strides = [1, 1, 1]} : vector<4x16x16xf32> to vector<4x15x16xf32>
    %6 = vector.extract_strided_slice %4 {offsets = [0, 15, 0], sizes = [4, 1, 16], strides = [1, 1, 1]} : vector<4x16x16xf32> to vector<4x1x16xf32>
    %7 = tpu.concatenate %5, %6 in 1 : vector<4x15x16xf32>, vector<4x1x16xf32> -> vector<4x16x16xf32>
    %8 = arith.maximumf %4, %7 : vector<4x16x16xf32>
    %c0_2 = arith.constant 0 : index
    %c0_3 = arith.constant 0 : index
    %c0_4 = arith.constant 0 : index
    %9 = vector.load %arg2[%c0_2, %c0_3, %c0_4] : memref<4x16x16xf32, #tpu.memory_space<vmem>>, vector<4x16x16xf32>
    tpu.vector_store %arg2[%c0_2, %c0_3, %c0_4], %8 {strides = array<i32>} : memref<4x16x16xf32, #tpu.memory_space<vmem>>, vector<4x16x16xf32>,
    return
  }
  func.func @transform_0(%arg0: i32) -> (i32, i32, i32) {
    %c0_i32 = arith.constant 0 : i32
    %c0_i32_0 = arith.constant 0 : i32
    %c0_i32_1 = arith.constant 0 : i32
    return %arg0, %c0_i32, %c0_i32_0 : i32, i32, i32
  }
  func.func @transform_1(%arg0: i32) -> (i32, i32, i32) {
    %c0_i32 = arith.constant 0 : i32
    %c0_i32_0 = arith.constant 0 : i32
    %c0_i32_1 = arith.constant 0 : i32
    return %arg0, %c0_i32, %c0_i32_0 : i32, i32, i32
  }
}

</mosaic_0001>

<llo_original>
// kernel: tpu_custom_call.1
$region0: #{tpu_custom_call.1}
  #allocation0 [shape = 'u32[]', space=smem, size = 0x4, offset = 0x4, fixed_abs, tag = 'smem constant byte address 0x4 - core index']
  #allocation1 [shape = 'u32[144,128]{1,0:T(1,128)}', space=vmem, size = 0x12000, scoped, tag = 'internal scratch']
  %s0 = inlined_call_operand.hbm [shape: f32[8,16,16], index: 0, kind: input, shape index: {}]
  %s1 = inlined_call_operand.hbm [shape: f32[8,16,16], index: 1, kind: output, shape index: {}]
  %s2 = sld [smem:[#allocation0]]
  $region41: #{tpu_custom_call.1} parent=0
    _
  %s4 = ssub.s32 1, %s2
  %s5 = scalar_select 0, %s4, %s2
  $region1: #{tpu_custom_call.1} parent=0
    #allocation2 [shape = 'u8[65536]{0}', space=vmem, size = 0x10000, scoped, tag = 'input window, operand 0']
    #allocation3 [shape = 's32[2]{0}', space=sflag, size = 0x8, scoped, tag = 'scoped memory for tpu_custom_call.1']
    #allocation4 [shape = 's32[2]{0}', space=sflag, size = 0x8, scoped, tag = 'scoped memory for tpu_custom_call.1']
    #allocation5 [shape = 'u8[65536]{0}', space=vmem, size = 0x10000, scoped, tag = 'output window, operand 0']
    %6 = vsyncpa [#allocation3], 0
    %s7 = scalar_lea.sflag [#allocation3], 1
    %8 = vsyncpa %s7, 0
    %9 = vsyncpa [#allocation4], 0
    %s10 = scalar_lea.sflag [#allocation4], 1
    %11 = vsyncpa %s10, 0
    loop: start=0, step=1, limit=4
    $region2: #{tpu_custom_call.1} parent=1 // loop_pre_header
      _
    $region3: #{tpu_custom_call.1} parent=1 // loop_header
      %s13 = sphi 0, %s17
      %p14 = scmp.ge.s32.totalorder %s13, 4
      %s23 = sphi 0, %s25
      %s26 = sphi 0, %s23
      %s27 = sphi 0, %s26
      %s43 = sphi 0, %s27
      %s49 = sphi 0, %s51
      %s52 = sphi 0, %s49
      %s53 = sphi 0, %s52
      %s69 = sphi 0, %s53
    $region4: #{tpu_custom_call.1} parent=1 // loop_header_branch
      %16 = sbr.rel (%p14) target = $region8
    $region5: #{tpu_custom_call.1} parent=1 // loop_body
      %s18 = ssub.s32 %s13, 1
      %s19 = ssub.s32 %s13, 2
      %s20 = sadd.s32 %s13, 1
      %s21 = ssub.s32 %s13, %s20
      %p22 = scmp.eq.s32.totalorder %s21, 0
      %s24 = sadd.s32 %s23, 1
      %s25 = scalar_select %p22, %s23, %s24
      %p28 = pneg %p22
      %p29 = scmp.eq.s32.totalorder %s13, 1
      %p30 = por %p28, %p29
      %p31 = scmp.ne.s32.totalorder %s23, %s26
      %p32 = scmp.eq.s32.totalorder %s13, 0
      %p33 = por %p31, %p32
      %p34 = scmp.ne.s32.totalorder %s23, %s26
      %p35 = scmp.eq.s32.totalorder %s18, 1
      %p36 = por %p34, %p35
      %p37 = scmp.ne.s32.totalorder %s26, %s27
      %p38 = scmp.eq.s32.totalorder %s18, 0
      %p39 = por %p37, %p38
      %p40 = scmp.ne.s32.totalorder %s26, %s27
      %p41 = scmp.eq.s32.totalorder %s19, 1
      %p42 = por %p40, %p41
      %p44 = scmp.ne.s32.totalorder %s27, %s43
      %p45 = scmp.eq.s32.totalorder %s19, 0
      %p46 = por %p44, %p45
      %s47 = ssub.s32 %s13, %s20
      %p48 = scmp.eq.s32.totalorder %s47, 0
      %s50 = sadd.s32 %s49, 1
      %s51 = scalar_select %p48, %s49, %s50
      %p54 = pneg %p48
      %p55 = scmp.eq.s32.totalorder %s13, 1
      %p56 = por %p54, %p55
      %p57 = scmp.ne.s32.totalorder %s49, %s52
      %p58 = scmp.eq.s32.totalorder %s13, 0
      %p59 = por %p57, %p58
      %p60 = scmp.ne.s32.totalorder %s49, %s52
      %p61 = scmp.eq.s32.totalorder %s18, 1
      %p62 = por %p60, %p61
      %p63 = scmp.ne.s32.totalorder %s52, %s53
      %p64 = scmp.eq.s32.totalorder %s18, 0
      %p65 = por %p63, %p64
      %p66 = scmp.ne.s32.totalorder %s52, %s53
      %p67 = scmp.eq.s32.totalorder %s19, 1
      %p68 = por %p66, %p67
      %p70 = scmp.ne.s32.totalorder %s53, %s69
      %p71 = scmp.eq.s32.totalorder %s19, 0
      %p72 = por %p70, %p71
      %p73 = scmp.le.s32.totalorder 1, %s13
      %p74 = scmp.lt.s32.totalorder %s13, 3
      %p75 = pnand %p73, %p74
      %p76 = pneg %p75
      // Predicated region
      $region9: #{tpu_custom_call.1} parent=5 // pred_check
        _
      $region10: #{tpu_custom_call.1} parent=5 // pred_check_branch
        %78 = sbr.rel (%p75) target = $region12
      $region11: #{tpu_custom_call.1} parent=5 // pred_region
        %s79 = ssub.s32 %s13, 1
      $region12: #{tpu_custom_call.1} parent=5 // pred_fallthru
        _
      %p80 = scmp.lt.s32.totalorder %s13, 2
      // Predicated region
      $region13: #{tpu_custom_call.1} parent=5 // pred_check
        %p81 = pneg %p80
      $region14: #{tpu_custom_call.1} parent=5 // pred_check_branch
        %83 = sbr.rel (%p81) target = $region16
      $region15: #{tpu_custom_call.1} parent=5 // pred_region
        // Predicated region
        $region17: #{tpu_custom_call.1} parent=15 // pred_check
          %p84 = pneg %p33
        $region18: #{tpu_custom_call.1} parent=15 // pred_check_branch
          %86 = sbr.rel (%p84) target = $region20
        $region19: #{tpu_custom_call.1} parent=15 // pred_region
          %s87 = sand.u32 %s23, 1
          %s88 = scalar_lea.sflag [#allocation3], %s87
          %s89 = sand.u32 %s23, 1
          %s90 = smul.addr %s89, 64
          %s91 = scalar_lea.vmem [#allocation2], %s90
          %s92 = smul.u32 4, %s13
          %s94 = ssub.s32 1024, 1024
          %95 = vsyncadd %s88, %s94
          %s96 = smul.addr %s92, 2
          %s97 = smul.addr %s96, 128
          %s98 = scalar_lea.hbm %s0, %s97
          %s99 = sshll.u32 %s91, 4
          %s100 = int_to_ptr.vmem [resolvable:$true] %s99
          %105 = dma.hbm_to_vmem [thread:$0]  %s98, 1024, %s100, %s88, 128, 128, 8
        $region20: #{tpu_custom_call.1} parent=15 // pred_fallthru
          _
      $region16: #{tpu_custom_call.1} parent=5 // pred_fallthru
        _
      %p106 = scmp.le.s32.totalorder 1, %s13
      %p107 = scmp.lt.s32.totalorder %s13, 3
      %p108 = pnand %p106, %p107
      %p109 = pneg %p108
      // Predicated region
      $region21: #{tpu_custom_call.1} parent=5 // pred_check
        _
      $region22: #{tpu_custom_call.1} parent=5 // pred_check_branch
        %111 = sbr.rel (%p108) target = $region24
      $region23: #{tpu_custom_call.1} parent=5 // pred_region
        %s112 = ssub.s32 %s13, 1
        %s113 = sand.u32 %s26, 1
        %s114 = scalar_lea.sflag [#allocation3], %s113
        %s115 = sand.u32 %s26, 1
        %s116 = smul.addr %s115, 64
        %s117 = scalar_lea.vmem [#allocation2], %s116
        // Predicated region
        $region25: #{tpu_custom_call.1} parent=23 // pred_check
          %p118 = pneg %p39
        $region26: #{tpu_custom_call.1} parent=23 // pred_check_branch
          %120 = sbr.rel (%p118) target = $region28
        $region27: #{tpu_custom_call.1} parent=23 // pred_region
          %121 = dma.done %s114, 1024
        $region28: #{tpu_custom_call.1} parent=23 // pred_fallthru
          _
        %s122 = sand.u32 %s26, 1
        %s123 = scalar_lea.sflag [#allocation3], %s122
        %s124 = sand.u32 %s26, 1
        %s125 = smul.addr %s124, 64
        %s126 = scalar_lea.vmem [#allocation2], %s125
        %p127 = pneg %p39
        %p128 = pneg %p36
        %p129 = pneg %p65
        %p130 = pneg %p62
        %s131 = sand.u32 %s52, 1
        %s132 = scalar_lea.sflag [#allocation4], %s131
        %s133 = sand.u32 %s52, 1
        %s134 = smul.addr %s133, 64
        %s135 = scalar_lea.vmem [#allocation5], %s134
        %s136 = smul.u32 4, %s18
        %s137 = smul.u32 4, %s18
        %v138 = vld [vmem:[%s117] sm:$0xff]
        %v139 = vld [vmem:[%s117 + $0x8] sm:$0xff]
        %v140 = vld [vmem:[%s117 + $0x10] sm:$0xff]
        %v141 = vld [vmem:[%s117 + $0x18] sm:$0xff]
        %v142 = vld [vmem:[%s117 + $0x20] sm:$0xff]
        %v143 = vld [vmem:[%s117 + $0x28] sm:$0xff]
        %v144 = vld [vmem:[%s117 + $0x30] sm:$0xff]
        %v145 = vld [vmem:[%s117 + $0x38] sm:$0xff]
        %154 = vrot.lane.b32.xlu0 %v138, 127
        %v155 = vpop.permute.xlu0 %154
        %156 = vrot.lane.b32.xlu0 %v139, 127
        %v157 = vpop.permute.xlu0 %156
        %158 = vrot.lane.b32.xlu0 %v140, 127
        %v159 = vpop.permute.xlu0 %158
        %160 = vrot.lane.b32.xlu0 %v141, 127
        %v161 = vpop.permute.xlu0 %160
        %162 = vrot.lane.b32.xlu0 %v142, 127
        %v163 = vpop.permute.xlu0 %162
        %164 = vrot.lane.b32.xlu0 %v143, 127
        %v165 = vpop.permute.xlu0 %164
        %166 = vrot.lane.b32.xlu0 %v144, 127
        %v167 = vpop.permute.xlu0 %166
        %168 = vrot.lane.b32.xlu0 %v145, 127
        %v169 = vpop.permute.xlu0 %168
        %vm178 = vcmask 121856
        %v179 = vsel %vm178, %v155, %v138
        %v180 = vsel %vm178, %v157, %v139
        %v181 = vsel %vm178, %v159, %v140
        %v182 = vsel %vm178, %v161, %v141
        %v183 = vsel %vm178, %v163, %v142
        %v184 = vsel %vm178, %v165, %v143
        %v185 = vsel %vm178, %v167, %v144
        %v186 = vsel %vm178, %v169, %v145
        %v187 = vmax.f32 %v138, %v179
        %v188 = vmax.f32 %v139, %v180
        %v189 = vmax.f32 %v140, %v181
        %v190 = vmax.f32 %v141, %v182
        %v191 = vmax.f32 %v142, %v183
        %v192 = vmax.f32 %v143, %v184
        %v193 = vmax.f32 %v144, %v185
        %v194 = vmax.f32 %v145, %v186
        %vm203 = vcmask 1046528
        %v204 = vrot.slane %v187, 1
        %v205 = vrot.slane %v188, 1
        %v206 = vsel %vm203, %v204, %v205
        %v207 = vrot.slane %v189, 1
        %v208 = vrot.slane %v190, 1
        %v209 = vsel %vm203, %v207, %v208
        %v210 = vrot.slane %v191, 1
        %v211 = vrot.slane %v192, 1
        %v212 = vsel %vm203, %v210, %v211
        %v213 = vrot.slane %v193, 1
        %v214 = vrot.slane %v194, 1
        %v215 = vsel %vm203, %v213, %v214
        %v224 = vsel %vm203, %v205, %v188
        %v225 = vsel %vm203, %v208, %v190
        %v226 = vsel %vm203, %v211, %v192
        %v227 = vsel %vm203, %v214, %v194
        %v228 = vmax.f32 %v187, %v206
        %v229 = vmax.f32 %v188, %v224
        %v230 = vmax.f32 %v189, %v209
        %v231 = vmax.f32 %v190, %v225
        %v232 = vmax.f32 %v191, %v212
        %v233 = vmax.f32 %v192, %v226
        %v234 = vmax.f32 %v193, %v215
        %v235 = vmax.f32 %v194, %v227
        %vm236 = vcmask 130048
        %237 = vst.msk [vmem:[%s135] sm:$0xff] %vm236, %v228
        %238 = vst.msk [vmem:[%s135 + $0x8] sm:$0xff] %vm236, %v229
        %239 = vst.msk [vmem:[%s135 + $0x10] sm:$0xff] %vm236, %v230
        %240 = vst.msk [vmem:[%s135 + $0x18] sm:$0xff] %vm236, %v231
        %241 = vst.msk [vmem:[%s135 + $0x20] sm:$0xff] %vm236, %v232
        %242 = vst.msk [vmem:[%s135 + $0x28] sm:$0xff] %vm236, %v233
        %243 = vst.msk [vmem:[%s135 + $0x30] sm:$0xff] %vm236, %v234
        %244 = vst.msk [vmem:[%s135 + $0x38] sm:$0xff] %vm236, %v235
        %s245 = sand.u32 %s52, 1
        %s246 = scalar_lea.sflag [#allocation4], %s245
        %s247 = sand.u32 %s52, 1
        %s248 = smul.addr %s247, 64
        %s249 = scalar_lea.vmem [#allocation5], %s248
        // Predicated region
        $region29: #{tpu_custom_call.1} parent=23 // pred_check
          %p250 = pneg %p62
        $region30: #{tpu_custom_call.1} parent=23 // pred_check_branch
          %252 = sbr.rel (%p250) target = $region32
        $region31: #{tpu_custom_call.1} parent=23 // pred_region
          %s253 = smul.u32 4, %s18
          %s255 = ssub.s32 1024, 1024
          %256 = vsyncadd %s246, %s255
          %s257 = smul.addr %s253, 2
          %s258 = smul.addr %s257, 128
          %s259 = scalar_lea.hbm %s1, %s258
          %s260 = sshll.u32 %s249, 4
          %s261 = int_to_ptr.vmem [resolvable:$true] %s260
          %266 = dma.vmem_to_hbm [thread:$0]  %s261, 1024, %s259, %s246, 128, 128, 8
        $region32: #{tpu_custom_call.1} parent=23 // pred_fallthru
          _
      $region24: #{tpu_custom_call.1} parent=5 // pred_fallthru
        _
      %p267 = scmp.le.s32.totalorder 2, %s13
      // Predicated region
      $region33: #{tpu_custom_call.1} parent=5 // pred_check
        %p268 = pneg %p267
      $region34: #{tpu_custom_call.1} parent=5 // pred_check_branch
        %270 = sbr.rel (%p268) target = $region36
      $region35: #{tpu_custom_call.1} parent=5 // pred_region
        %s271 = ssub.s32 %s13, 2
        // Predicated region
        $region37: #{tpu_custom_call.1} parent=35 // pred_check
          %p272 = pneg %p68
        $region38: #{tpu_custom_call.1} parent=35 // pred_check_branch
          %274 = sbr.rel (%p272) target = $region40
        $region39: #{tpu_custom_call.1} parent=35 // pred_region
          %s275 = sand.u32 %s53, 1
          %s276 = scalar_lea.sflag [#allocation4], %s275
          %s277 = sand.u32 %s53, 1
          %s278 = smul.addr %s277, 64
          %s279 = scalar_lea.vmem [#allocation5], %s278
          %280 = dma.done %s276, 1024
        $region40: #{tpu_custom_call.1} parent=35 // pred_fallthru
          _
      $region36: #{tpu_custom_call.1} parent=5 // pred_fallthru
        _
    $region6: #{tpu_custom_call.1} parent=1 // loop_footer
      %s17 = sadd.s32 1, %s13
    $region7: #{tpu_custom_call.1} parent=1 // loop_footer_branch
      %12 = sbr.rel target = $region3
    $region8: #{tpu_custom_call.1} parent=1 // loop_exit
      _
    %281 = vsyncpa [#allocation3], 1
    %s282 = scalar_lea.sflag [#allocation3], 1
    %283 = vsyncpa %s282, 1
    %284 = vsyncpa [#allocation4], 1
    %s285 = scalar_lea.sflag [#allocation4], 1
    %286 = vsyncpa %s285, 1

</llo_original>
